<compile_context>
chip_gen: v6e
topology: v6e:2x2x1
jax: 0.10.0
libtpu: 0.0.40
codegen_flags: <defaults>
</compile_context>

<pallas_src>
import functools

import jax
import jax.numpy as jnp
from jax.experimental import pallas as pl
from jax.experimental.pallas import tpu as pltpu

_LANE = 128  # TPU lane width


def _round_up(x, m):
    return -(-x // m) * m


def _cdiv(a, b):
    return -(-a // b)


def _chip_config():
    """Per-generation tiling knobs (best effort; safe defaults otherwise)."""
    kind = ""
    try:
        kind = (jax.devices()[0].device_kind or "").lower()
    except Exception:
        pass
    if "v7" in kind:
        # 64 MiB physical VMEM, 2 TensorCores: 3 in x 2 buf x 4 MiB = 24 MiB.
        return dict(block_bytes=4 << 20, vmem_limit=32 << 20, two_seg=True)
    if "v6" in kind:
        # 128 MiB physical VMEM, 1 TensorCore: go bigger, drop the extra segment.
        return dict(block_bytes=8 << 20, vmem_limit=64 << 20, two_seg=False)
    if "v5" in kind:
        return dict(block_bytes=2 << 20, vmem_limit=32 << 20, two_seg=False)
    return dict(block_bytes=2 << 20, vmem_limit=32 << 20, two_seg=False)


# --------------------------------------------------------------------------
# Kernels
# --------------------------------------------------------------------------
def _make_flat_kernel(has_mask, want_mask_sum, tr, sub, inner, n_rows,
                      need_tail_mask, unroll):
    """Global-sum kernel over a flattened (R, 128) view.

    Input blocks are (tr, 128); outputs are per-segment (8, 128) f32
    accumulators kept resident across the inner ("arbitrary") grid axis.
    The body strip-mines the block in (sub, 128) slabs so f32 intermediates
    stay small regardless of the DMA block size.
    """
    assert not (want_mask_sum and not has_mask)
    n_sub = tr // sub
    n_in = 3 if has_mask else 2

    def kernel(*refs):
        logp_ref, adv_ref = refs[0], refs[1]
        mask_ref = refs[2] if has_mask else None
        loss_acc = refs[n_in]
        mask_acc = refs[n_in + 1] if want_mask_sum else None

        @pl.when(pl.program_id(1) == 0)
        def _init():
            loss_acc[...] = jnp.zeros_like(loss_acc)
            if want_mask_sum:
                mask_acc[...] = jnp.zeros_like(mask_acc)

        block_row0 = (pl.program_id(0) * inner + pl.program_id(1)) * tr

        def body(i, carry):
            start = i * sub
            if not isinstance(start, int):
                start = pl.multiple_of(start, sub)
            lp = logp_ref[pl.ds(start, sub), :].astype(jnp.float32)
            adv = adv_ref[pl.ds(start, sub), :].astype(jnp.float32)
            loss = (-lp) * jnp.exp(adv)
            m = None
            if has_mask:
                m = mask_ref[pl.ds(start, sub), :].astype(jnp.float32)
                loss = loss * m
            if need_tail_mask:
                rows = block_row0 + start + jax.lax.broadcasted_iota(
                    jnp.int32, (sub, _LANE), 0)
                valid = rows < n_rows
                loss = jnp.where(valid, loss, 0.0)
                if want_mask_sum:
                    m = jnp.where(valid, m, 0.0)
            # Fold (sub,128) -> (8,128): pure per-lane VPU adds, no cross-lane work.
            loss8 = jnp.sum(loss.reshape(sub // 8, 8, _LANE), axis=0)
            out = (carry[0] + loss8,)
            if want_mask_sum:
                m8 = jnp.sum(m.reshape(sub // 8, 8, _LANE), axis=0)
                out = out + (carry[1] + m8,)
            return out

        zero = jnp.zeros((8, _LANE), jnp.float32)
        init = (zero, zero) if want_mask_sum else (zero,)
        if n_sub == 1:
            res = body(0, init)
        else:
            res = jax.lax.fori_loop(0, n_sub, body, init, unroll=unroll)

        loss_acc[...] += res[0]
        if want_mask_sum:
            mask_acc[...] += res[1]

    return kernel


def _make_small_flat_kernel(has_mask, want_mask_sum):
    """Single-block fallback for tiny inputs (< 8 rows of 128 tokens)."""
    n_in = 3 if has_mask else 2

    def kernel(*refs):
        logp_ref, adv_ref = refs[0], refs[1]
        mask_ref = refs[2] if has_mask else None
        loss_out = refs[n_in]
        mask_out = refs[n_in + 1] if want_mask_sum else None

        lp = logp_ref[...].astype(jnp.float32)
        adv = adv_ref[...].astype(jnp.float32)
        loss = (-lp) * jnp.exp(adv)
        m = None
        if has_mask:
            m = mask_ref[...].astype(jnp.float32)
            loss = loss * m
        loss_out[...] = jnp.sum(loss, axis=0, keepdims=True)
        if want_mask_sum:
            mask_out[...] = jnp.sum(m, axis=0, keepdims=True)

    return kernel


def _make_row_kernel(has_mask, tc, n_chunks, need_tail_mask):
    """Per-row kernel for the sequence-level mean path.

    Inputs are (B, tc, 128) chunk blocks; outputs are lane-dense (B, 128)
    accumulators kept resident across the chunk grid axis.
    """
    n_in = 3 if has_mask else 2

    def kernel(*refs):
        logp_ref, adv_ref = refs[0], refs[1]
        mask_ref = refs[2] if has_mask else None
        loss_acc = refs[n_in]
        mask_acc = refs[n_in + 1] if has_mask else None

        @pl.when(pl.program_id(0) == 0)
        def _init():
            loss_acc[...] = jnp.zeros_like(loss_acc)
            if has_mask:
                mask_acc[...] = jnp.zeros_like(mask_acc)

        lp = logp_ref[...].astype(jnp.float32)        # (B, tc, 128)
        adv = adv_ref[...].astype(jnp.float32)
        loss = (-lp) * jnp.exp(adv)
        m = None
        if has_mask:
            m = mask_ref[...].astype(jnp.float32)
            loss = loss * m
        if need_tail_mask:
            chunks = pl.program_id(0) * tc + jax.lax.broadcasted_iota(
                jnp.int32, loss.shape, 1)
            valid = chunks < n_chunks
            loss = jnp.where(valid, loss, 0.0)
            if has_mask:
                m = jnp.where(valid, m, 0.0)
        loss_acc[...] += jnp.sum(loss, axis=1)        # (B, 128)
        if has_mask:
            mask_acc[...] += jnp.sum(m, axis=1)

    return kernel


# --------------------------------------------------------------------------
# Wrappers
# --------------------------------------------------------------------------
def _flat_sums(log_probs, advantages, action_mask, want_mask_sum,
               block_bytes, vmem_limit, two_seg, num_segments):
    """Global sums over all tokens via a contiguous (R, 128) flattened view.

    Returns sum(loss*mask) (and sum(mask) if want_mask_sum).
    """
    B, S = log_probs.shape
    has_mask = action_mask is not None
    N = B * S
    n_pad = _round_up(N, _LANE)
    R = n_pad // _LANE

    def flat(x):
        x = x.reshape(N)
        if n_pad != N:
            # TODO(synk): the rare non-128-multiple tail still pays one pad copy;
            # zeros contribute 0 to both sums so correctness is unaffected.
            x = jnp.pad(x, (0, n_pad - N))
        return x.reshape(R, _LANE)

    inputs = [flat(log_probs), flat(advantages)]
    if has_mask:
        inputs.append(flat(action_mask))
    itemsize = max(x.dtype.itemsize for x in inputs)

    n_out = 2 if want_mask_sum else 1
    cost = pl.CostEstimate(
        flops=6 * N,
        transcendentals=N,
        bytes_accessed=sum(int(x.size) * x.dtype.itemsize for x in inputs)
        + n_out * 8 * _LANE * 4)

    if R < 8:
        # Tiny input: one full-dims block, no grid.
        outs = pl.pallas_call(
            _make_small_flat_kernel(has_mask, want_mask_sum),
            out_shape=tuple(jax.ShapeDtypeStruct((1, _LANE), jnp.float32)
                            for _ in range(n_out)),
            compiler_params=pltpu.CompilerParams(vmem_limit_bytes=vmem_limit),
            cost_estimate=cost,
        )(*inputs)
    else:
        # Dtype-aware block sizing: tr rows of 128 tokens per DMA block.
        tr_target = max(8, (block_bytes // (_LANE * itemsize)) // 8 * 8)
        tr_target = min(tr_target, (R // 8) * 8)
        sub = min(512, tr_target)                 # strip-mine slab (multiple of 8)
        n_sub = max(1, tr_target // sub)
        tr = n_sub * sub
        g = _cdiv(R, tr)
        need_tail_mask = (g * tr != R)            # partial last block -> iota mask

        if num_segments is not None:
            nseg_req = max(1, int(num_segments))
        else:
            nseg_req = 2 if two_seg else 1
        # Only split segments when it divides evenly (no padded/OOB blocks).
        nseg = nseg_req if (nseg_req > 1 and g >= nseg_req and g % nseg_req == 0) else 1
        inner = g // nseg
        unroll = True if n_sub <= 8 else 4

        kern = _make_flat_kernel(has_mask, want_mask_sum, tr, sub, inner,
                                 R, need_tail_mask, unroll)
        in_spec = pl.BlockSpec((tr, _LANE), lambda s, c: (s * inner + c, 0))
        out_spec = pl.BlockSpec((None, 8, _LANE), lambda s, c: (s, 0, 0))
        outs = pl.pallas_call(
            kern,
            out_shape=tuple(jax.ShapeDtypeStruct((nseg, 8, _LANE), jnp.float32)
                            for _ in range(n_out)),
            grid_spec=pltpu.PrefetchScalarGridSpec(
                num_scalar_prefetch=0,
                grid=(nseg, inner),
                in_specs=[in_spec] * len(inputs),
                out_specs=tuple(out_spec for _ in range(n_out))),
            compiler_params=pltpu.CompilerParams(
                dimension_semantics=("parallel", "arbitrary"),
                vmem_limit_bytes=vmem_limit),
            cost_estimate=cost,
        )(*inputs)

    if not isinstance(outs, (list, tuple)):
        outs = (outs,)
    sums = [jnp.sum(o) for o in outs]
    if want_mask_sum:
        return sums[0], sums[1]
    return sums[0]


def _row_sums(log_probs, advantages, action_mask, block_bytes, vmem_limit):
    """Per-row (sum(loss*mask), sum(mask)) as two (B,) arrays."""
    B, S = log_probs.shape
    has_mask = action_mask is not None
    s_pad = _round_up(S, _LANE)
    C = s_pad // _LANE

    def prep(x):
        if s_pad != S:
            # TODO(synk): rare non-128-multiple S pays one pad copy on this path.
            x = jnp.pad(x, ((0, 0), (0, s_pad - S)))
        return x.reshape(B, C, _LANE)

    inputs = [prep(log_probs), prep(advantages)]
    if has_mask:
        inputs.append(prep(action_mask))
    itemsize = max(x.dtype.itemsize for x in inputs)

    row_block_bytes = min(block_bytes, 1 << 20)   # modest blocks; no strip-mine here
    tc_target = max(8, (row_block_bytes // (B * _LANE * itemsize)) // 8 * 8)
    if C <= tc_target:
        tc, g, need_tail_mask = C, 1, False       # full-dims block, exact
    else:
        tc = min(tc_target, (C // 8) * 8)
        g = _cdiv(C, tc)
        need_tail_mask = (g * tc != C)

    n_out = 2 if has_mask else 1
    cost = pl.CostEstimate(
        flops=6 * B * s_pad,
        transcendentals=B * s_pad,
        bytes_accessed=sum(int(x.size) * x.dtype.itemsize for x in inputs)
        + n_out * B * _LANE * 4)

    in_spec = pl.BlockSpec((B, tc, _LANE), lambda c: (0, c, 0))
    out_spec = pl.BlockSpec((B, _LANE), lambda c: (0, 0))
    outs = pl.pallas_call(
        _make_row_kernel(has_mask, tc, C, need_tail_mask),
        out_shape=tuple(jax.ShapeDtypeStruct((B, _LANE), jnp.float32)
                        for _ in range(n_out)),
        grid_spec=pltpu.PrefetchScalarGridSpec(
            num_scalar_prefetch=0,
            grid=(g,),
            in_specs=[in_spec] * len(inputs),
            out_specs=tuple(out_spec for _ in range(n_out))),
        compiler_params=pltpu.CompilerParams(
            dimension_semantics=("arbitrary",),
            vmem_limit_bytes=vmem_limit),
        cost_estimate=cost,
    )(*inputs)
    if not isinstance(outs, (list, tuple)):
        outs = (outs,)
    row_loss = jnp.sum(outs[0], axis=-1)
    if has_mask:
        row_mask = jnp.sum(outs[1], axis=-1)
    else:
        row_mask = jnp.full((B,), float(S), jnp.float32)  # true S, not padded
    return row_loss, row_mask


@functools.partial(
    jax.jit,
    static_argnames=("token_level_loss", "block_bytes", "num_segments"))
def dpg_loss(log_probs, old_log_probs, advantages, action_mask=None,
             global_response_length=None, token_level_loss=True,
             block_bytes=None, num_segments=None):
    """Forward pass of openrlhf DPGLoss.

    old_log_probs / clip_eps_low / clip_eps_high are unused by the reference
    forward() and are ignored here as well.
    """
    del old_log_probs
    B, S = log_probs.shape

    if action_mask is not None and action_mask.dtype == jnp.bool_:
        action_mask = action_mask.astype(log_probs.dtype)

    cfg = _chip_config()
    bb = int(block_bytes) if block_bytes is not None else cfg["block_bytes"]
    vmem_limit = cfg["vmem_limit"]
    two_seg = cfg["two_seg"]

    if global_response_length is not None:
        # (loss * action_mask).sum() / (1e-10 + global_response_length);
        # a missing mask is treated as all-ones.
        loss_sum = _flat_sums(log_probs, advantages, action_mask,
                              want_mask_sum=False, block_bytes=bb,
                              vmem_limit=vmem_limit, two_seg=two_seg,
                              num_segments=num_segments)
        return loss_sum / (1e-10 + global_response_length)

    if token_level_loss:
        if action_mask is not None:
            loss_sum, mask_sum = _flat_sums(
                log_probs, advantages, action_mask, want_mask_sum=True,
                block_bytes=bb, vmem_limit=vmem_limit, two_seg=two_seg,
                num_segments=num_segments)
            return loss_sum / mask_sum
        # No-mask fast path: 2-input kernel + analytic token count (true B*S).
        loss_sum = _flat_sums(log_probs, advantages, None,
                              want_mask_sum=False, block_bytes=bb,
                              vmem_limit=vmem_limit, two_seg=two_seg,
                              num_segments=num_segments)
        return loss_sum / jnp.float32(B * S)

    # Sequence-level: mean over rows of per-row masked means.
    row_loss, row_mask = _row_sums(log_probs, advantages, action_mask,
                                   block_bytes=bb, vmem_limit=vmem_limit)
    # NOTE: no epsilon on the per-row denominator, matching PyTorch exactly
    # (a fully-masked row yields NaN/Inf there too).
    return jnp.mean(row_loss / row_mask)


# --------------------------------------------------------------------------
# Pure-JAX reference + checks
# --------------------------------------------------------------------------
def _reference(log_probs, advantages, action_mask, global_response_length,
               token_level_loss):
    lp = log_probs.astype(jnp.float32)
    adv = advantages.astype(jnp.float32)
    loss = -lp * jnp.exp(adv)
    mask = (jnp.ones_like(lp) if action_mask is None
            else action_mask.astype(jnp.float32))
    if global_response_length is not None:
        return (loss * mask).sum() / (1e-10 + global_response_length)
    if token_level_loss:
        return (loss * mask).sum() / mask.sum()
    return ((loss * mask).sum(-1) / mask.sum(-1)).mean()


if __name__ == "__main__":
    key = jax.random.PRNGKey(0)
    k = jax.random.split(key, 8)
    ok = True

    def check(name, out, ref):
        good = bool(jnp.allclose(out, ref, rtol=1e-4, atol=1e-5))
        if not good:
            print(f"MISMATCH {name}: got {out}, want {ref}")
        return good

    # Case 1: f32, masked, token-level (flat masked path, single block).
    B, S = 2, 1024
    logp = -jnp.abs(jax.random.normal(k[0], (B, S), dtype=jnp.float32))
    oldp = -jnp.abs(jax.random.normal(k[1], (B, S), dtype=jnp.float32))
    adv = 0.5 * jax.random.normal(k[2], (B, S), dtype=jnp.float32)
    mask = (jax.random.uniform(k[3], (B, S)) > 0.3).astype(jnp.float32)
    out = jax.block_until_ready(dpg_loss(logp, oldp, adv, mask, None,
                                         token_level_loss=True))
    ok &= check("token_level_masked", out, _reference(logp, adv, mask, None, True))

    # Case 2: sequence-level mean (per-row path, single full block).
    out = jax.block_until_ready(dpg_loss(logp, oldp, adv, mask, None,
                                         token_level_loss=False))
    ok &= check("seq_level_masked", out, _reference(logp, adv, mask, None, False))

    # Case 3: global_response_length + non-128-aligned S (pad path, loss-only).
    Bo, So = 2, 1000
    logp_o = -jnp.abs(jax.random.normal(k[4], (Bo, So), dtype=jnp.float32))
    adv_o = 0.5 * jax.random.normal(k[5], (Bo, So), dtype=jnp.float32)
    mask_o = (jax.random.uniform(k[6], (Bo, So)) > 0.3).astype(jnp.float32)
    grl = jnp.float32(mask_o.sum())
    out = jax.block_until_ready(dpg_loss(logp_o, logp_o, adv_o, mask_o, grl,
                                         token_level_loss=True))
    ok &= check("global_resp_len", out, _reference(logp_o, adv_o, mask_o, grl, True))

    # Case 4: bf16, no mask (2-input fast path), multi-block grid + 2 segments.
    Bb, Sb = 2, 4096
    logp_b = (-jnp.abs(jax.random.normal(k[7], (Bb, Sb)))).astype(jnp.bfloat16)
    adv_b = (0.25 * jax.random.normal(k[0], (Bb, Sb))).astype(jnp.bfloat16)
    out = jax.block_until_ready(
        dpg_loss(logp_b, logp_b, adv_b, None, None, token_level_loss=True,
                 block_bytes=4096, num_segments=2))
    ok &= check("bf16_unmasked_2seg", out, _reference(logp_b, adv_b, None, None, True))

    # Case 5: flat path with a partial last block (in-kernel tail mask).
    Bt, St = 3, 1024
    logp_t = -jnp.abs(jax.random.normal(k[1], (Bt, St), dtype=jnp.float32))
    adv_t = 0.5 * jax.random.normal(k[2], (Bt, St), dtype=jnp.float32)
    mask_t = (jax.random.uniform(k[3], (Bt, St)) > 0.5).astype(jnp.float32)
    out = jax.block_until_ready(
        dpg_loss(logp_t, logp_t, adv_t, mask_t, None, token_level_loss=True,
                 block_bytes=8192))
    ok &= check("flat_tail_mask", out, _reference(logp_t, adv_t, mask_t, None, True))

    # Case 6: per-row path with chunk tiling + tail mask.
    Br, Sr = 2, 2560
    logp_r = -jnp.abs(jax.random.normal(k[4], (Br, Sr), dtype=jnp.float32))
    adv_r = 0.5 * jax.random.normal(k[5], (Br, Sr), dtype=jnp.float32)
    mask_r = (jax.random.uniform(k[6], (Br, Sr)) > 0.3).astype(jnp.float32)
    out = jax.block_until_ready(
        dpg_loss(logp_r, logp_r, adv_r, mask_r, None, token_level_loss=False,
                 block_bytes=8192))
    ok &= check("row_tail_mask", out, _reference(logp_r, adv_r, mask_r, None, False))

    # Case 7: tiny input (< 1024 tokens -> single-block fallback, unmasked).
    logp_s = (-jnp.abs(jax.random.normal(k[7], (1, 256)))).astype(jnp.bfloat16)
    adv_s = (0.25 * jax.random.normal(k[0], (1, 256))).astype(jnp.bfloat16)
    out = jax.block_until_ready(dpg_loss(logp_s, logp_s, adv_s, None, None,
                                         token_level_loss=True))
    ok &= check("tiny_unmasked", out, _reference(logp_s, adv_s, None, None, True))

    # Case 8: larger input exercising the in-kernel strip-mine fori_loop.
    Bl, Sl = 2, 131072
    logp_l = -jnp.abs(jax.random.normal(k[1], (Bl, Sl), dtype=jnp.float32))
    adv_l = 0.5 * jax.random.normal(k[2], (Bl, Sl), dtype=jnp.float32)
    mask_l = (jax.random.uniform(k[3], (Bl, Sl)) > 0.3).astype(jnp.float32)
    out = jax.block_until_ready(
        dpg_loss(logp_l, logp_l, adv_l, mask_l, None, token_level_loss=True,
                 block_bytes=1 << 20))
    ok &= check("strip_mined", out, _reference(logp_l, adv_l, mask_l, None, True))

    if ok:
        print("KERNEL_OK")
    else:
        raise SystemExit("mismatch vs reference")
</pallas_src>

<mosaic_0001>
module attributes {stable_mosaic.version = 11 : i64} {
  func.func @kernel(%arg0: i32, %arg1: i32, %arg2: memref<16x128xf32, #tpu.memory_space<vmem>>, %arg3: memref<16x128xf32, #tpu.memory_space<vmem>>, %arg4: memref<16x128xf32, #tpu.memory_space<vmem>>, %arg5: memref<1x8x128xf32, #tpu.memory_space<vmem>>, %arg6: memref<1x8x128xf32, #tpu.memory_space<vmem>>) attributes {dimension_semantics = [#tpu.dimension_semantics<parallel>, #tpu.dimension_semantics<arbitrary>], iteration_bounds = array<i64: 1, 1>, scalar_prefetch = 0 : i64, scratch_operands = 0 : i64, tpu.core_type = #tpu.core_type<tc>, window_params = [{transform_indices = @transform_0, window_bounds = array<i64: 16, 128>}, {transform_indices = @transform_1, window_bounds = array<i64: 16, 128>}, {transform_indices = @transform_2, window_bounds = array<i64: 16, 128>}, {transform_indices = @transform_3, window_bounds = array<i64: 1, 8, 128>}, {transform_indices = @transform_4, window_bounds = array<i64: 1, 8, 128>}]} {
    %c0_i32 = arith.constant 0 : i32
    %0 = arith.cmpi eq, %arg1, %c0_i32 : i32
    %1 = arith.extui %0 : i1 to i32
    %c0_i32_0 = arith.constant 0 : i32
    %2 = arith.cmpi ne, %1, %c0_i32_0 : i32
    scf.if %2 {
      %cst_21 = arith.constant 0.000000e+00 : f32
      %30 = vector.broadcast %cst_21 : f32 to vector<8x128xf32>
      %c0_22 = arith.constant 0 : index
      %c0_23 = arith.constant 0 : index
      %c0_24 = arith.constant 0 : index
      %31 = vector.load %arg5[%c0_22, %c0_23, %c0_24] : memref<1x8x128xf32, #tpu.memory_space<vmem>>, vector<1x8x128xf32>
      %32 = vector.shape_cast %31 : vector<1x8x128xf32> to vector<8x128xf32>
      %33 = vector.shape_cast %30 : vector<8x128xf32> to vector<1x8x128xf32>
      tpu.vector_store %arg5[%c0_22, %c0_23, %c0_24], %33 {strides = array<i32>} : memref<1x8x128xf32, #tpu.memory_space<vmem>>, vector<1x8x128xf32>,
      %cst_25 = arith.constant 0.000000e+00 : f32
      %34 = vector.broadcast %cst_25 : f32 to vector<8x128xf32>
      %c0_26 = arith.constant 0 : index
      %c0_27 = arith.constant 0 : index
      %c0_28 = arith.constant 0 : index
      %35 = vector.load %arg6[%c0_26, %c0_27, %c0_28] : memref<1x8x128xf32, #tpu.memory_space<vmem>>, vector<1x8x128xf32>
      %36 = vector.shape_cast %35 : vector<1x8x128xf32> to vector<8x128xf32>
      %37 = vector.shape_cast %34 : vector<8x128xf32> to vector<1x8x128xf32>
      tpu.vector_store %arg6[%c0_26, %c0_27, %c0_28], %37 {strides = array<i32>} : memref<1x8x128xf32, #tpu.memory_space<vmem>>, vector<1x8x128xf32>,
    } else {
    }
    %cst = arith.constant 0.000000e+00 : f32
    %3 = vector.broadcast %cst : f32 to vector<8x128xf32>
    %c0 = arith.constant 0 : index
    %c0_1 = arith.constant 0 : index
    %4 = vector.load %arg2[%c0, %c0_1] : memref<16x128xf32, #tpu.memory_space<vmem>>, vector<16x128xf32>
    %c0_2 = arith.constant 0 : index
    %c0_3 = arith.constant 0 : index
    %5 = vector.load %arg3[%c0_2, %c0_3] : memref<16x128xf32, #tpu.memory_space<vmem>>, vector<16x128xf32>
    %cst_4 = arith.constant 0.000000e+00 : f32
    %6 = vector.broadcast %cst_4 : f32 to vector<16x128xf32>
    %7 = arith.subf %6, %4 : vector<16x128xf32>
    %8 = math.exp %5 : vector<16x128xf32>
    %9 = arith.mulf %7, %8 : vector<16x128xf32>
    %c0_5 = arith.constant 0 : index
    %c0_6 = arith.constant 0 : index
    %10 = vector.load %arg4[%c0_5, %c0_6] : memref<16x128xf32, #tpu.memory_space<vmem>>, vector<16x128xf32>
    %11 = arith.mulf %9, %10 : vector<16x128xf32>
    %12 = vector.shape_cast %11 : vector<16x128xf32> to vector<2x8x128xf32>
    %cst_7 = arith.constant dense<0.000000e+00> : vector<8x128xf32>
    %13 = vector.multi_reduction <add>, %12, %cst_7 [0] : vector<2x8x128xf32> to vector<8x128xf32>
    %14 = arith.addf %3, %13 : vector<8x128xf32>
    %15 = vector.shape_cast %10 : vector<16x128xf32> to vector<2x8x128xf32>
    %cst_8 = arith.constant dense<0.000000e+00> : vector<8x128xf32>
    %16 = vector.multi_reduction <add>, %15, %cst_8 [0] : vector<2x8x128xf32> to vector<8x128xf32>
    %17 = arith.addf %3, %16 : vector<8x128xf32>
    %c0_9 = arith.constant 0 : index
    %c0_10 = arith.constant 0 : index
    %c0_11 = arith.constant 0 : index
    %18 = vector.load %arg5[%c0_9, %c0_10, %c0_11] : memref<1x8x128xf32, #tpu.memory_space<vmem>>, vector<1x8x128xf32>
    %19 = vector.shape_cast %18 : vector<1x8x128xf32> to vector<8x128xf32>
    %20 = arith.addf %19, %14 : vector<8x128xf32>
    %c0_12 = arith.constant 0 : index
    %c0_13 = arith.constant 0 : index
    %c0_14 = arith.constant 0 : index
    %21 = vector.load %arg5[%c0_12, %c0_13, %c0_14] : memref<1x8x128xf32, #tpu.memory_space<vmem>>, vector<1x8x128xf32>
    %22 = vector.shape_cast %21 : vector<1x8x128xf32> to vector<8x128xf32>
    %23 = vector.shape_cast %20 : vector<8x128xf32> to vector<1x8x128xf32>
    tpu.vector_store %arg5[%c0_12, %c0_13, %c0_14], %23 {strides = array<i32>} : memref<1x8x128xf32, #tpu.memory_space<vmem>>, vector<1x8x128xf32>,
    %c0_15 = arith.constant 0 : index
    %c0_16 = arith.constant 0 : index
    %c0_17 = arith.constant 0 : index
    %24 = vector.load %arg6[%c0_15, %c0_16, %c0_17] : memref<1x8x128xf32, #tpu.memory_space<vmem>>, vector<1x8x128xf32>
    %25 = vector.shape_cast %24 : vector<1x8x128xf32> to vector<8x128xf32>
    %26 = arith.addf %25, %17 : vector<8x128xf32>
    %c0_18 = arith.constant 0 : index
    %c0_19 = arith.constant 0 : index
    %c0_20 = arith.constant 0 : index
    %27 = vector.load %arg6[%c0_18, %c0_19, %c0_20] : memref<1x8x128xf32, #tpu.memory_space<vmem>>, vector<1x8x128xf32>
    %28 = vector.shape_cast %27 : vector<1x8x128xf32> to vector<8x128xf32>
    %29 = vector.shape_cast %26 : vector<8x128xf32> to vector<1x8x128xf32>
    tpu.vector_store %arg6[%c0_18, %c0_19, %c0_20], %29 {strides = array<i32>} : memref<1x8x128xf32, #tpu.memory_space<vmem>>, vector<1x8x128xf32>,
    return
  }
  func.func @transform_0(%arg0: i32, %arg1: i32) -> (i32, i32) {
    %c1_i32 = arith.constant 1 : i32
    %0 = arith.muli %arg0, %c1_i32 : i32
    %1 = arith.addi %0, %arg1 : i32
    %c0_i32 = arith.constant 0 : i32
    %c0_i32_0 = arith.constant 0 : i32
    return %1, %c0_i32 : i32, i32
  }
  func.func @transform_1(%arg0: i32, %arg1: i32) -> (i32, i32) {
    %c1_i32 = arith.constant 1 : i32
    %0 = arith.muli %arg0, %c1_i32 : i32
    %1 = arith.addi %0, %arg1 : i32
    %c0_i32 = arith.constant 0 : i32
    %c0_i32_0 = arith.constant 0 : i32
    return %1, %c0_i32 : i32, i32
  }
  func.func @transform_2(%arg0: i32, %arg1: i32) -> (i32, i32) {
    %c1_i32 = arith.constant 1 : i32
    %0 = arith.muli %arg0, %c1_i32 : i32
    %1 = arith.addi %0, %arg1 : i32
    %c0_i32 = arith.constant 0 : i32
    %c0_i32_0 = arith.constant 0 : i32
    return %1, %c0_i32 : i32, i32
  }
  func.func @transform_3(%arg0: i32, %arg1: i32) -> (i32, i32, i32) {
    %c0_i32 = arith.constant 0 : i32
    %c0_i32_0 = arith.constant 0 : i32
    %c0_i32_1 = arith.constant 0 : i32
    return %arg0, %c0_i32, %c0_i32_0 : i32, i32, i32
  }
  func.func @transform_4(%arg0: i32, %arg1: i32) -> (i32, i32, i32) {
    %c0_i32 = arith.constant 0 : i32
    %c0_i32_0 = arith.constant 0 : i32
    %c0_i32_1 = arith.constant 0 : i32
    return %arg0, %c0_i32, %c0_i32_0 : i32, i32, i32
  }
}

</mosaic_0001>

<llo_original>
// kernel: dpg_loss.1
$region0: #{dpg_loss.1}
  #allocation0 [shape = 'u32[]', space=smem, size = 0x4, offset = 0x4, fixed_abs, tag = 'smem constant byte address 0x4 - core index']
  #allocation1 [shape = 'u32[144,128]{1,0:T(1,128)}', space=vmem, size = 0x12000, scoped, tag = 'internal scratch']
  %s0 = inlined_call_operand.vmem [shape: f32[16,128], index: 0, kind: input, shape index: {}]
  %s1 = inlined_call_operand.vmem [shape: f32[16,128], index: 1, kind: input, shape index: {}]
  %s2 = inlined_call_operand.vmem [shape: f32[16,128], index: 2, kind: input, shape index: {}]
  %s3 = inlined_call_operand.vmem [shape: f32[1,8,128], index: 3, kind: output, shape index: {0}]
  %s4 = inlined_call_operand.vmem [shape: f32[1,8,128], index: 4, kind: output, shape index: {1}]
  %5 = xla_tuple %s3, %s4
  %s6 = sld [smem:[#allocation0]]
  $region34: #{dpg_loss.1} parent=0
    _
  %s8 = ssub.s32 1, %s6
  %s9 = scalar_select 0, %s8, %s6
  // Predicated region
  $region2: #{dpg_loss.1} parent=0 // pred_check
    _
  $region3: #{dpg_loss.1} parent=0 // pred_check_branch
    %11 = sbr.rel (0) target = $region5
  $region4: #{dpg_loss.1} parent=0 // pred_region
    %s12 = sadd.s32 0, 0
    %s13 = smul.u32 2, %s12
    %p14 = scmp.lt.s32.totalorder %s13, 1
    %s15 = scalar_select %p14, %s13, 1
    %s16 = smul.addr %s15, 8
    %s17 = scalar_lea.vmem %s0, %s16
    %s18 = sadd.s32 0, 0
    %s19 = smul.u32 2, %s18
  $region5: #{dpg_loss.1} parent=0 // pred_fallthru
    _
  // Predicated region
  $region6: #{dpg_loss.1} parent=0 // pred_check
    _
  $region7: #{dpg_loss.1} parent=0 // pred_check_branch
    %21 = sbr.rel (0) target = $region9
  $region8: #{dpg_loss.1} parent=0 // pred_region
    %s22 = sadd.s32 0, 0
    %s23 = smul.u32 2, %s22
    %p24 = scmp.lt.s32.totalorder %s23, 1
    %s25 = scalar_select %p24, %s23, 1
    %s26 = smul.addr %s25, 8
    %s27 = scalar_lea.vmem %s1, %s26
    %s28 = sadd.s32 0, 0
    %s29 = smul.u32 2, %s28
  $region9: #{dpg_loss.1} parent=0 // pred_fallthru
    _
  // Predicated region
  $region10: #{dpg_loss.1} parent=0 // pred_check
    _
  $region11: #{dpg_loss.1} parent=0 // pred_check_branch
    %31 = sbr.rel (0) target = $region13
  $region12: #{dpg_loss.1} parent=0 // pred_region
    %s32 = sadd.s32 0, 0
    %s33 = smul.u32 2, %s32
    %p34 = scmp.lt.s32.totalorder %s33, 1
    %s35 = scalar_select %p34, %s33, 1
    %s36 = smul.addr %s35, 8
    %s37 = scalar_lea.vmem %s2, %s36
    %s38 = sadd.s32 0, 0
    %s39 = smul.u32 2, %s38
  $region13: #{dpg_loss.1} parent=0 // pred_fallthru
    _
  %s40 = sadd.s32 0, 0
  %s41 = smul.u32 2, %s40
  %p42 = scmp.lt.s32.totalorder %s41, 1
  %s43 = scalar_select %p42, %s41, 1
  %s44 = smul.addr %s43, 8
  %s45 = scalar_lea.vmem %s0, %s44
  %s46 = sadd.s32 0, 0
  %s47 = smul.u32 2, %s46
  %p48 = scmp.lt.s32.totalorder %s47, 1
  %s49 = scalar_select %p48, %s47, 1
  %s50 = smul.addr %s49, 8
  %s51 = scalar_lea.vmem %s1, %s50
  %s52 = sadd.s32 0, 0
  %s53 = smul.u32 2, %s52
  %p54 = scmp.lt.s32.totalorder %s53, 1
  %s55 = scalar_select %p54, %s53, 1
  %s56 = smul.addr %s55, 8
  %s57 = scalar_lea.vmem %s2, %s56
  %s58 = sadd.s32 0, 0
  %s59 = smul.u32 2, %s58
  %p60 = scmp.lt.s32.totalorder %s59, 1
  %s61 = scalar_select %p60, %s59, 1
  %s62 = smul.addr %s61, 8
  %s63 = scalar_lea.vmem %s0, %s62
  %s64 = sadd.s32 0, 0
  %s65 = smul.u32 2, %s64
  %s66 = sadd.s32 0, 0
  %s67 = smul.u32 2, %s66
  %p68 = scmp.lt.s32.totalorder %s67, 1
  %s69 = scalar_select %p68, %s67, 1
  %s70 = smul.addr %s69, 8
  %s71 = scalar_lea.vmem %s1, %s70
  %s72 = sadd.s32 0, 0
  %s73 = smul.u32 2, %s72
  %s74 = sadd.s32 0, 0
  %s75 = smul.u32 2, %s74
  %p76 = scmp.lt.s32.totalorder %s75, 1
  %s77 = scalar_select %p76, %s75, 1
  %s78 = smul.addr %s77, 8
  %s79 = scalar_lea.vmem %s2, %s78
  %s80 = sadd.s32 0, 0
  %s81 = smul.u32 2, %s80
  %p82 = scmp.eq.s32.totalorder 0, 0
  // Predicated region
  $region14: #{dpg_loss.1} parent=0 // pred_check
    %p83 = pneg %p82
  $region15: #{dpg_loss.1} parent=0 // pred_check_branch
    %85 = sbr.rel (%p83) target = $region17
  $region16: #{dpg_loss.1} parent=0 // pred_region
    %86 = vst [vmem:[%s3] sm:$0xff] 0.0
    %87 = vst [vmem:[%s4] sm:$0xff] 0.0
  $region17: #{dpg_loss.1} parent=0 // pred_fallthru
    _
  %v88 = vld [vmem:[%s63] sm:$0xff]
  %v89 = vld [vmem:[%s63 + $0x8] sm:$0xff]
  %v90 = vld [vmem:[%s71] sm:$0xff]
  %v91 = vld [vmem:[%s71 + $0x8] sm:$0xff]
  %v92 = vsub.f32 0.0, %v88
  %v93 = vsub.f32 0.0, %v89
  %v94 = vmul.f32 %v90, 1.442695
  %v95 = vpow.pop %v94
  %v96 = vmul.f32 %v91, 1.442695
  %v97 = vpow.pop %v96
  %v98 = vmul.f32 %v92, %v95
  %v99 = vmul.f32 %v93, %v97
  %v100 = vld [vmem:[%s79] sm:$0xff]
  %v101 = vld [vmem:[%s79 + $0x8] sm:$0xff]
  %v102 = vmul.f32 %v98, %v100
  %v103 = vmul.f32 %v99, %v101
  %v104 = vadd.f32 %v102, %v103
  %v105 = vadd.f32 %v104, 0.0
  %v106 = vadd.f32 %v100, %v101
  %v107 = vadd.f32 %v106, 0.0
  %v108 = vld [vmem:[%s3] sm:$0xff]
  %v109 = vadd.f32 %v108, %v105
  %110 = vst [vmem:[%s3] sm:$0xff] %v109
  %v111 = vld [vmem:[%s4] sm:$0xff]
  %v112 = vadd.f32 %v111, %v107
  %113 = vst [vmem:[%s4] sm:$0xff] %v112
  // Predicated region
  $region18: #{dpg_loss.1} parent=0 // pred_check
    _
  $region19: #{dpg_loss.1} parent=0 // pred_check_branch
    %115 = sbr.rel (0) target = $region21
  $region20: #{dpg_loss.1} parent=0 // pred_region
    _
  $region21: #{dpg_loss.1} parent=0 // pred_fallthru
    _
  // Predicated region
  $region22: #{dpg_loss.1} parent=0 // pred_check
    _
  $region23: #{dpg_loss.1} parent=0 // pred_check_branch
    %117 = sbr.rel (0) target = $region25
  $region24: #{dpg_loss.1} parent=0 // pred_region
    _
  $region25: #{dpg_loss.1} parent=0 // pred_fallthru
    _
  // Predicated region
  $region26: #{dpg_loss.1} parent=0 // pred_check
    _
  $region27: #{dpg_loss.1} parent=0 // pred_check_branch
    %119 = sbr.rel (0) target = $region29
  $region28: #{dpg_loss.1} parent=0 // pred_region
    _
  $region29: #{dpg_loss.1} parent=0 // pred_fallthru
    _
  // Predicated region
  $region30: #{dpg_loss.1} parent=0 // pred_check
    _
  $region31: #{dpg_loss.1} parent=0 // pred_check_branch
    %121 = sbr.rel (0) target = $region33
  $region32: #{dpg_loss.1} parent=0 // pred_region
    _
  $region33: #{dpg_loss.1} parent=0 // pred_fallthru
    _

</llo_original>
